<compile_context>
chip_gen: v6e
topology: v6e:2x2x1
jax: 0.10.0
libtpu: 0.0.40
codegen_flags: <defaults>
</compile_context>

<pallas_src>
import functools

import jax
import jax.numpy as jnp
from jax import lax
from jax.experimental import pallas as pl
from jax.experimental.pallas import tpu as pltpu


def _round_up(x: int, m: int) -> int:
    return (x + m - 1) // m * m


def _siglip_tile_kernel(scale_ref, bias_ref, img_ref, txt_ref, out_ref,
                        *, tm: int, tn: int, n_valid: int, n_pad: int):
    i = pl.program_id(0)          # row tile  ("parallel")
    j = pl.program_id(1)          # col tile  ("arbitrary" / reduction axis)

    # Zero the per-row-tile accumulator at the start of each j sweep.
    @pl.when(j == 0)
    def _():
        out_ref[...] = jnp.zeros_like(out_ref)

    # bf16 tiles straight into the MXU in native [m,k]x[k,n] form (text tile is
    # pre-transposed in the wrapper); f32 accumulation.
    z = lax.dot_general(
        img_ref[...], txt_ref[...],
        dimension_numbers=(((1,), (0,)), ((), ())),
        preferred_element_type=jnp.float32,
    )
    # Scale/bias applied once to the f32 accumulator tile.
    z = z * scale_ref[0] + bias_ref[0]                        # [tm, tn] logits

    # Off-diagonal label is -1 everywhere:
    #   logsigmoid(-z) = min(-z, 0) - log1p(exp(-|z|))   (numerically stable)
    ls = jnp.minimum(-z, 0.0) - jnp.log1p(jnp.exp(-jnp.abs(z)))

    # Lane/sublane-dense partial: fold sublane groups of 8 -> (8, tn).
    out_ref[...] += ls.reshape(tm // 8, 8, tn).sum(axis=0)[None]

    # Diagonal tile: labels are +1 on the global diagonal.  Using the exact
    # identity  logsigmoid(z) - logsigmoid(-z) = z, only the diagonal logits
    # need adding on top of the logsigmoid(-z) sum (TM == TN guarantees the
    # global diagonal only lands in i == j tiles).  The valid-row compare is
    # only emitted when the batch was actually padded, and only on diag tiles.
    @pl.when(i == j)
    def _():
        rl = lax.broadcasted_iota(jnp.int32, (tm, tn), 0)
        cl = lax.broadcasted_iota(jnp.int32, (tm, tn), 1)
        dmask = rl == cl
        if n_valid != n_pad:
            dmask = jnp.logical_and(dmask, (i * tm + rl) < n_valid)
        dpart = jnp.where(dmask, z, 0.0).reshape(tm // 8, 8, tn).sum(axis=0)
        out_ref[...] += dpart[None]


def siglip_loss(image_features, text_features, logit_scale, logit_bias,
                *, tile=None, matmul_dtype=jnp.bfloat16):
    """Pallas-backed SigLIP loss (world_size == 1 path). Returns scalar f32."""
    assert image_features.shape == text_features.shape
    n, d = image_features.shape

    # Tile size: 512 for large batches (TM == TN keeps the diagonal inside
    # i == j tiles); small batches round the tile up to a 128 multiple so lanes
    # stay full.  On v5e, if spills show up at 512x512, drop to a rectangular
    # (tm=512, tn=256) tile — not done by default here.
    if tile is None:
        tile = 512 if n >= 512 else _round_up(n, 128)
    tile = max(128, _round_up(tile, 128))
    n_pad = _round_up(n, tile)
    d_pad = _round_up(d, 128)            # full lane occupancy for feature loads

    # MXU operands in bf16 (accumulation stays f32 inside the kernel).
    img = image_features.astype(matmul_dtype)
    txt = text_features.astype(matmul_dtype)
    if n_pad != n or d_pad != d:
        img = jnp.pad(img, ((0, n_pad - n), (0, d_pad - d)))
        txt = jnp.pad(txt, ((0, n_pad - n), (0, d_pad - d)))
    txt_t = txt.T                         # one-time [D, N] layout change

    num_i = n_pad // tile
    num_j = n_pad // tile

    scale_arr = jnp.asarray(logit_scale, jnp.float32).reshape(1)
    bias_arr = jnp.asarray(logit_bias, jnp.float32).reshape(1)

    kernel = functools.partial(_siglip_tile_kernel, tm=tile, tn=tile,
                               n_valid=n, n_pad=n_pad)

    itemsize = jnp.dtype(matmul_dtype).itemsize
    cost = pl.CostEstimate(
        flops=2 * n_pad * n_pad * d_pad,
        transcendentals=2 * n_pad * n_pad,            # exp + log1p per logit
        bytes_accessed=(n_pad * d_pad * itemsize            # image, once per row tile
                        + num_i * n_pad * d_pad * itemsize  # text, re-streamed per row tile
                        + num_i * 8 * tile * 4),            # partial outputs
    )

    partials = pl.pallas_call(
        kernel,
        grid=(num_i, num_j),
        in_specs=[
            pl.BlockSpec(memory_space=pltpu.MemorySpace.SMEM),   # logit_scale
            pl.BlockSpec(memory_space=pltpu.MemorySpace.SMEM),   # logit_bias
            pl.BlockSpec((tile, d_pad), lambda i, j: (i, 0)),    # image tile [TM, D]
            pl.BlockSpec((d_pad, tile), lambda i, j: (0, j)),    # text tile  [D, TN]
        ],
        out_specs=pl.BlockSpec((1, 8, tile), lambda i, j: (i, 0, 0)),
        out_shape=jax.ShapeDtypeStruct((num_i, 8, tile), jnp.float32),
        compiler_params=pltpu.CompilerParams(
            dimension_semantics=("parallel", "arbitrary"),
            vmem_limit_bytes=48 * 1024 * 1024,
        ),
        cost_estimate=cost,
    )(scale_arr, bias_arr, img, txt_t)

    # Final cross-tile reduction + normalization in the wrapper.
    total = jnp.sum(partials)

    # Closed-form correction for zero-padded rows/cols: every padded cell has
    # z == bias exactly and was counted with label -1, so subtract
    # (n_pad^2 - n^2) * logsigmoid(-bias).  (Same stable formula as in-kernel.)
    if n_pad != n:
        bias_f32 = jnp.asarray(logit_bias, jnp.float32)
        logsig_neg_bias = (jnp.minimum(-bias_f32, 0.0)
                           - jnp.log1p(jnp.exp(-jnp.abs(bias_f32))))
        total = total - jnp.float32(n_pad * n_pad - n * n) * logsig_neg_bias

    return -total / jnp.float32(n)


def _siglip_loss_ref(image_features, text_features, logit_scale, logit_bias,
                     matmul_dtype=jnp.float32):
    """Pure-JAX reference matching the PyTorch module (optionally bf16 matmul)."""
    img = image_features.astype(matmul_dtype)
    txt = text_features.astype(matmul_dtype)
    logits = (jnp.asarray(logit_scale, jnp.float32)
              * jnp.dot(img, txt.T, preferred_element_type=jnp.float32)
              + jnp.asarray(logit_bias, jnp.float32))
    n = img.shape[0]
    labels = 2.0 * jnp.eye(n, dtype=jnp.float32) - 1.0
    return -jnp.sum(jax.nn.log_sigmoid(labels * logits)) / n


if __name__ == "__main__":
    key = jax.random.PRNGKey(0)

    def make_features(k, n, d):
        ki, kt = jax.random.split(k)
        img = jax.random.normal(ki, (n, d), dtype=jnp.float32)
        txt = jax.random.normal(kt, (n, d), dtype=jnp.float32)
        img = img / jnp.linalg.norm(img, axis=-1, keepdims=True)
        txt = txt / jnp.linalg.norm(txt, axis=-1, keepdims=True)
        return img, txt

    logit_scale = jnp.float32(10.0)   # typical exp(t) in SigLIP
    logit_bias = jnp.float32(-10.0)

    k0, k1 = jax.random.split(key)

    # Small single-tile case (auto tile rounds to 128; exercises the padding
    # correction path).
    img_s, txt_s = make_features(k0, 8, 32)
    loss_s = jax.block_until_ready(siglip_loss(img_s, txt_s, logit_scale, logit_bias))
    ref_s_bf16 = _siglip_loss_ref(img_s, txt_s, logit_scale, logit_bias, jnp.bfloat16)
    ref_s_f32 = _siglip_loss_ref(img_s, txt_s, logit_scale, logit_bias)
    assert jnp.allclose(loss_s, ref_s_bf16, rtol=1e-3, atol=1e-3), (loss_s, ref_s_bf16)
    assert jnp.allclose(loss_s, ref_s_f32, rtol=2e-2, atol=2e-2), (loss_s, ref_s_f32)

    # Multi-tile case (explicit tile=128 -> 3x3 grid) exercising accumulation
    # across j, the diagonal branch and the non-tile-aligned batch correction.
    img_l, txt_l = make_features(k1, 320, 64)
    loss_l = jax.block_until_ready(
        siglip_loss(img_l, txt_l, logit_scale, logit_bias, tile=128))
    ref_l_bf16 = _siglip_loss_ref(img_l, txt_l, logit_scale, logit_bias, jnp.bfloat16)
    ref_l_f32 = _siglip_loss_ref(img_l, txt_l, logit_scale, logit_bias)
    assert jnp.allclose(loss_l, ref_l_bf16, rtol=1e-3, atol=1e-3), (loss_l, ref_l_bf16)
    assert jnp.allclose(loss_l, ref_l_f32, rtol=2e-2, atol=2e-2), (loss_l, ref_l_f32)

    print("KERNEL_OK")
</pallas_src>

<mosaic_0001>
module attributes {stable_mosaic.version = 11 : i64} {
  func.func @_siglip_tile_kernel(%arg0: i32, %arg1: i32, %arg2: memref<1xf32, #tpu.memory_space<smem>>, %arg3: memref<1xf32, #tpu.memory_space<smem>>, %arg4: memref<128x128xbf16, #tpu.memory_space<vmem>>, %arg5: memref<128x128xbf16, #tpu.memory_space<vmem>>, %arg6: memref<1x8x128xf32, #tpu.memory_space<vmem>>) attributes {dimension_semantics = [#tpu.dimension_semantics<parallel>, #tpu.dimension_semantics<arbitrary>], iteration_bounds = array<i64: 1, 1>, scalar_prefetch = 0 : i64, scratch_operands = 0 : i64, tpu.core_type = #tpu.core_type<tc>, window_params = [{transform_indices = @transform_0, window_bounds = array<i64: 1>}, {transform_indices = @transform_1, window_bounds = array<i64: 1>}, {transform_indices = @transform_2, window_bounds = array<i64: 128, 128>}, {transform_indices = @transform_3, window_bounds = array<i64: 128, 128>}, {transform_indices = @transform_4, window_bounds = array<i64: 1, 8, 128>}]} {
    %c0_i32 = arith.constant 0 : i32
    %0 = arith.cmpi eq, %arg1, %c0_i32 : i32
    %1 = arith.extui %0 : i1 to i32
    %c0_i32_0 = arith.constant 0 : i32
    %2 = arith.cmpi ne, %1, %c0_i32_0 : i32
    scf.if %2 {
      %cst_17 = arith.constant 0.000000e+00 : f32
      %31 = vector.broadcast %cst_17 : f32 to vector<1x8x128xf32>
      %c0_18 = arith.constant 0 : index
      %c0_19 = arith.constant 0 : index
      %c0_20 = arith.constant 0 : index
      %32 = vector.load %arg6[%c0_18, %c0_19, %c0_20] : memref<1x8x128xf32, #tpu.memory_space<vmem>>, vector<1x8x128xf32>
      tpu.vector_store %arg6[%c0_18, %c0_19, %c0_20], %31 {strides = array<i32>} : memref<1x8x128xf32, #tpu.memory_space<vmem>>, vector<1x8x128xf32>,
    } else {
    }
    %c0 = arith.constant 0 : index
    %c0_1 = arith.constant 0 : index
    %3 = vector.load %arg4[%c0, %c0_1] : memref<128x128xbf16, #tpu.memory_space<vmem>>, vector<128x128xbf16>
    %c0_2 = arith.constant 0 : index
    %c0_3 = arith.constant 0 : index
    %4 = vector.load %arg5[%c0_2, %c0_3] : memref<128x128xbf16, #tpu.memory_space<vmem>>, vector<128x128xbf16>
    %cst = arith.constant dense<0.000000e+00> : vector<128x128xf32>
    %5 = tpu.matmul %3, %4, %cst {dimension_numbers = #tpu.dot_dimension_numbers<[1], [0], [0], [1], [0, 0, 1, 1], [], []>} : vector<128x128xbf16>, vector<128x128xbf16>, vector<128x128xf32> -> vector<128x128xf32>
    %c0_4 = arith.constant 0 : index
    %6 = memref.load %arg2[%c0_4] : memref<1xf32, #tpu.memory_space<smem>>
    %7 = vector.broadcast %6 : f32 to vector<128x128xf32>
    %8 = arith.mulf %5, %7 : vector<128x128xf32>
    %c0_5 = arith.constant 0 : index
    %9 = memref.load %arg3[%c0_5] : memref<1xf32, #tpu.memory_space<smem>>
    %10 = vector.broadcast %9 : f32 to vector<128x128xf32>
    %11 = arith.addf %8, %10 : vector<128x128xf32>
    %cst_6 = arith.constant 0.000000e+00 : f32
    %12 = vector.broadcast %cst_6 : f32 to vector<128x128xf32>
    %13 = arith.subf %12, %11 : vector<128x128xf32>
    %cst_7 = arith.constant 0.000000e+00 : f32
    %14 = vector.broadcast %cst_7 : f32 to vector<128x128xf32>
    %15 = arith.minimumf %13, %14 : vector<128x128xf32>
    %16 = math.absf %11 : vector<128x128xf32>
    %cst_8 = arith.constant 0.000000e+00 : f32
    %17 = vector.broadcast %cst_8 : f32 to vector<128x128xf32>
    %18 = arith.subf %17, %16 : vector<128x128xf32>
    %19 = math.exp %18 : vector<128x128xf32>
    %20 = math.log1p %19 : vector<128x128xf32>
    %21 = arith.subf %15, %20 : vector<128x128xf32>
    %c0_9 = arith.constant 0 : index
    %c0_10 = arith.constant 0 : index
    %c0_11 = arith.constant 0 : index
    %22 = vector.load %arg6[%c0_9, %c0_10, %c0_11] : memref<1x8x128xf32, #tpu.memory_space<vmem>>, vector<1x8x128xf32>
    %23 = vector.shape_cast %21 : vector<128x128xf32> to vector<16x8x128xf32>
    %cst_12 = arith.constant dense<0.000000e+00> : vector<8x128xf32>
    %24 = vector.multi_reduction <add>, %23, %cst_12 [0] : vector<16x8x128xf32> to vector<8x128xf32>
    %25 = vector.shape_cast %24 : vector<8x128xf32> to vector<1x8x128xf32>
    %26 = arith.addf %22, %25 : vector<1x8x128xf32>
    %c0_13 = arith.constant 0 : index
    %c0_14 = arith.constant 0 : index
    %c0_15 = arith.constant 0 : index
    %27 = vector.load %arg6[%c0_13, %c0_14, %c0_15] : memref<1x8x128xf32, #tpu.memory_space<vmem>>, vector<1x8x128xf32>
    tpu.vector_store %arg6[%c0_13, %c0_14, %c0_15], %26 {strides = array<i32>} : memref<1x8x128xf32, #tpu.memory_space<vmem>>, vector<1x8x128xf32>,
    %28 = arith.cmpi eq, %arg0, %arg1 : i32
    %29 = arith.extui %28 : i1 to i32
    %c0_i32_16 = arith.constant 0 : i32
    %30 = arith.cmpi ne, %29, %c0_i32_16 : i32
    scf.if %30 {
      %31 = tpu.iota {dimensions = array<i32: 0>} : vector<128x128xi32>
      %32 = tpu.iota {dimensions = array<i32: 1>} : vector<128x128xi32>
      %33 = arith.cmpi eq, %31, %32 : vector<128x128xi32>
      %c128_i32 = arith.constant 128 : i32
      %34 = arith.muli %arg0, %c128_i32 : i32
      %35 = vector.broadcast %34 : i32 to vector<128x128xi32>
      %36 = arith.addi %35, %31 : vector<128x128xi32>
      %c8_i32 = arith.constant 8 : i32
      %37 = vector.broadcast %c8_i32 : i32 to vector<128x128xi32>
      %38 = arith.cmpi slt, %36, %37 : vector<128x128xi32>
      %39 = arith.andi %33, %38 : vector<128x128xi1>
      %cst_17 = arith.constant 0.000000e+00 : f32
      %40 = vector.broadcast %cst_17 : f32 to vector<128x128xf32>
      %41 = arith.select %39, %11, %40 : vector<128x128xi1>, vector<128x128xf32>
      %42 = vector.shape_cast %41 : vector<128x128xf32> to vector<16x8x128xf32>
      %cst_18 = arith.constant dense<0.000000e+00> : vector<8x128xf32>
      %43 = vector.multi_reduction <add>, %42, %cst_18 [0] : vector<16x8x128xf32> to vector<8x128xf32>
      %c0_19 = arith.constant 0 : index
      %c0_20 = arith.constant 0 : index
      %c0_21 = arith.constant 0 : index
      %44 = vector.load %arg6[%c0_19, %c0_20, %c0_21] : memref<1x8x128xf32, #tpu.memory_space<vmem>>, vector<1x8x128xf32>
      %45 = vector.shape_cast %43 : vector<8x128xf32> to vector<1x8x128xf32>
      %46 = arith.addf %44, %45 : vector<1x8x128xf32>
      %c0_22 = arith.constant 0 : index
      %c0_23 = arith.constant 0 : index
      %c0_24 = arith.constant 0 : index
      %47 = vector.load %arg6[%c0_22, %c0_23, %c0_24] : memref<1x8x128xf32, #tpu.memory_space<vmem>>, vector<1x8x128xf32>
      tpu.vector_store %arg6[%c0_22, %c0_23, %c0_24], %46 {strides = array<i32>} : memref<1x8x128xf32, #tpu.memory_space<vmem>>, vector<1x8x128xf32>,
    } else {
    }
    return
  }
  func.func @transform_0(%arg0: i32, %arg1: i32) -> i32 {
    %c0_i32 = arith.constant 0 : i32
    %c0_i32_0 = arith.constant 0 : i32
    return %c0_i32 : i32
  }
  func.func @transform_1(%arg0: i32, %arg1: i32) -> i32 {
    %c0_i32 = arith.constant 0 : i32
    %c0_i32_0 = arith.constant 0 : i32
    return %c0_i32 : i32
  }
  func.func @transform_2(%arg0: i32, %arg1: i32) -> (i32, i32) {
    %c0_i32 = arith.constant 0 : i32
    %c0_i32_0 = arith.constant 0 : i32
    return %arg0, %c0_i32 : i32, i32
  }
  func.func @transform_3(%arg0: i32, %arg1: i32) -> (i32, i32) {
    %c0_i32 = arith.constant 0 : i32
    %c0_i32_0 = arith.constant 0 : i32
    return %c0_i32, %arg1 : i32, i32
  }
  func.func @transform_4(%arg0: i32, %arg1: i32) -> (i32, i32, i32) {
    %c0_i32 = arith.constant 0 : i32
    %c0_i32_0 = arith.constant 0 : i32
    %c0_i32_1 = arith.constant 0 : i32
    return %arg0, %c0_i32, %c0_i32_0 : i32, i32, i32
  }
}

</mosaic_0001>

<llo_original>
// kernel: tpu_custom_call.1
$region0: #{tpu_custom_call.1}
  #allocation0 [shape = 'u32[]', space=smem, size = 0x4, offset = 0x4, fixed_abs, tag = 'smem constant byte address 0x4 - core index']
  #allocation1 [shape = 'u32[144,128]{1,0:T(1,128)}', space=vmem, size = 0x12000, scoped, tag = 'internal scratch']
  #allocation2 [shape = 'f32[1]{0:T(128)S(6)}', space=smem, size = 0x200, scoped, tag = 'scoped memory for tpu_custom_call.1']
  #allocation3 [shape = 'f32[1]{0:T(128)S(6)}', space=smem, size = 0x200, scoped, tag = 'scoped memory for tpu_custom_call.1']
  %s0 = inlined_call_operand.<no memory space> [shape: f32[1], index: 0, kind: input, shape index: {}]
  %s1 = inlined_call_operand.<no memory space> [shape: f32[1], index: 1, kind: input, shape index: {}]
  %s2 = inlined_call_operand.hbm [shape: bf16[128,128], index: 2, kind: input, shape index: {}]
  %s3 = inlined_call_operand.hbm [shape: bf16[128,128], index: 3, kind: input, shape index: {}]
  %s4 = inlined_call_operand.hbm [shape: f32[1,8,128], index: 4, kind: output, shape index: {}]
  %s5 = sld [smem:[#allocation0]]
  $region42: #{tpu_custom_call.1} parent=0
    _
  %s7 = ssub.s32 1, %s5
  %s8 = scalar_select 0, %s7, %s5
  %9 = sst [smem:[#allocation2]] %s0
  %10 = sst [smem:[#allocation3]] %s1
  $region1: #{tpu_custom_call.1} parent=0
    #allocation4 [shape = 'u8[32768]{0}', space=vmem, size = 0x8000, scoped, tag = 'input window, operand 2, single buffered']
    #allocation5 [shape = 's32[1]{0}', space=sflag, size = 0x4, scoped, tag = 'scoped memory for tpu_custom_call.1']
    #allocation6 [shape = 's32[1]{0}', space=sflag, size = 0x4, scoped, tag = 'scoped memory for tpu_custom_call.1']
    #allocation7 [shape = 'u8[32768]{0}', space=vmem, size = 0x8000, scoped, tag = 'input window, operand 3, single buffered']
    #allocation8 [shape = 's32[1]{0}', space=sflag, size = 0x4, scoped, tag = 'scoped memory for tpu_custom_call.1']
    #allocation9 [shape = 'u8[4096]{0}', space=vmem, size = 0x1000, scoped, tag = 'output window, operand 0, single buffered']
    %11 = vsyncpa [#allocation5], 0
    %12 = vsyncpa [#allocation8], 0
    %13 = vsyncpa [#allocation6], 0
    // Predicated region
    $region2: #{tpu_custom_call.1} parent=1 // pred_check
      _
    $region3: #{tpu_custom_call.1} parent=1 // pred_check_branch
      %15 = sbr.rel (0) target = $region5
    $region4: #{tpu_custom_call.1} parent=1 // pred_region
      _
    $region5: #{tpu_custom_call.1} parent=1 // pred_fallthru
      _
    // Predicated region
    $region6: #{tpu_custom_call.1} parent=1 // pred_check
      _
    $region7: #{tpu_custom_call.1} parent=1 // pred_check_branch
      %17 = sbr.rel (0) target = $region9
    $region8: #{tpu_custom_call.1} parent=1 // pred_region
      _
    $region9: #{tpu_custom_call.1} parent=1 // pred_fallthru
      _
    // Predicated region
    $region10: #{tpu_custom_call.1} parent=1 // pred_check
      _
    $region11: #{tpu_custom_call.1} parent=1 // pred_check_branch
      %19 = sbr.rel (0) target = $region13
    $region12: #{tpu_custom_call.1} parent=1 // pred_region
      %s21 = ssub.s32 1024, 1024
      %22 = vsyncadd [#allocation5], %s21
      %s23 = sshll.u32 [#allocation4], 4
      %s24 = int_to_ptr.vmem [resolvable:$true] %s23
      %29 = dma.hbm_to_vmem [thread:$0]  %s2, 1024, %s24, [#allocation5], 64, 64, 4
    $region13: #{tpu_custom_call.1} parent=1 // pred_fallthru
      _
    // Predicated region
    $region14: #{tpu_custom_call.1} parent=1 // pred_check
      _
    $region15: #{tpu_custom_call.1} parent=1 // pred_check_branch
      %31 = sbr.rel (0) target = $region17
    $region16: #{tpu_custom_call.1} parent=1 // pred_region
      %s33 = ssub.s32 1024, 1024
      %34 = vsyncadd [#allocation8], %s33
      %s35 = sshll.u32 [#allocation7], 4
      %s36 = int_to_ptr.vmem [resolvable:$true] %s35
      %41 = dma.hbm_to_vmem [thread:$0]  %s3, 1024, %s36, [#allocation8], 64, 64, 4
    $region17: #{tpu_custom_call.1} parent=1 // pred_fallthru
      _
    // Predicated region
    $region18: #{tpu_custom_call.1} parent=1 // pred_check
      _
    $region19: #{tpu_custom_call.1} parent=1 // pred_check_branch
      %43 = sbr.rel (0) target = $region21
    $region20: #{tpu_custom_call.1} parent=1 // pred_region
      %44 = dma.done [#allocation5], 1024
    $region21: #{tpu_custom_call.1} parent=1 // pred_fallthru
      _
    // Predicated region
    $region22: #{tpu_custom_call.1} parent=1 // pred_check
      _
    $region23: #{tpu_custom_call.1} parent=1 // pred_check_branch
      %46 = sbr.rel (0) target = $region25
    $region24: #{tpu_custom_call.1} parent=1 // pred_region
      %47 = dma.done [#allocation8], 1024
    $region25: #{tpu_custom_call.1} parent=1 // pred_fallthru
      _
    %p49 = scmp.eq.s32.totalorder 0, 0
    // Predicated region
    $region26: #{tpu_custom_call.1} parent=1 // pred_check
      %p50 = pneg %p49
    $region27: #{tpu_custom_call.1} parent=1 // pred_check_branch
      %52 = sbr.rel (%p50) target = $region29
    $region28: #{tpu_custom_call.1} parent=1 // pred_region
      %53 = vst [vmem:[#allocation9] sm:$0xff] 0.0
    $region29: #{tpu_custom_call.1} parent=1 // pred_fallthru
      _
    %v54 = vld [vmem:[#allocation4] sm:$0xf]
    %v55 = vld [vmem:[#allocation4 + $0x4] sm:$0xf]
    %v56 = vld [vmem:[#allocation4 + $0x8] sm:$0xf]
    %v57 = vld [vmem:[#allocation4 + $0xc] sm:$0xf]
    %v58 = vld [vmem:[#allocation4 + $0x10] sm:$0xf]
    %v59 = vld [vmem:[#allocation4 + $0x14] sm:$0xf]
    %v60 = vld [vmem:[#allocation4 + $0x18] sm:$0xf]
    %v61 = vld [vmem:[#allocation4 + $0x1c] sm:$0xf]
    %v62 = vld [vmem:[#allocation4 + $0x20] sm:$0xf]
    %v63 = vld [vmem:[#allocation4 + $0x24] sm:$0xf]
    %v64 = vld [vmem:[#allocation4 + $0x28] sm:$0xf]
    %v65 = vld [vmem:[#allocation4 + $0x2c] sm:$0xf]
    %v66 = vld [vmem:[#allocation4 + $0x30] sm:$0xf]
    %v67 = vld [vmem:[#allocation4 + $0x34] sm:$0xf]
    %v68 = vld [vmem:[#allocation4 + $0x38] sm:$0xf]
    %v69 = vld [vmem:[#allocation4 + $0x3c] sm:$0xf]
    %v70 = vld [vmem:[#allocation7] sm:$0xf]
    %v71 = vld [vmem:[#allocation7 + $0x4] sm:$0xf]
    %v72 = vld [vmem:[#allocation7 + $0x8] sm:$0xf]
    %v73 = vld [vmem:[#allocation7 + $0xc] sm:$0xf]
    %v74 = vld [vmem:[#allocation7 + $0x10] sm:$0xf]
    %v75 = vld [vmem:[#allocation7 + $0x14] sm:$0xf]
    %v76 = vld [vmem:[#allocation7 + $0x18] sm:$0xf]
    %v77 = vld [vmem:[#allocation7 + $0x1c] sm:$0xf]
    %v78 = vld [vmem:[#allocation7 + $0x20] sm:$0xf]
    %v79 = vld [vmem:[#allocation7 + $0x24] sm:$0xf]
    %v80 = vld [vmem:[#allocation7 + $0x28] sm:$0xf]
    %v81 = vld [vmem:[#allocation7 + $0x2c] sm:$0xf]
    %v82 = vld [vmem:[#allocation7 + $0x30] sm:$0xf]
    %v83 = vld [vmem:[#allocation7 + $0x34] sm:$0xf]
    %v84 = vld [vmem:[#allocation7 + $0x38] sm:$0xf]
    %v85 = vld [vmem:[#allocation7 + $0x3c] sm:$0xf]
    %v102 = vunpack.c.l.b16 %v54
    %v103 = vunpack.c.l.b16 %v55
    %v104 = vunpack.c.l.b16 %v56
    %v105 = vunpack.c.l.b16 %v57
    %v106 = vunpack.c.l.b16 %v58
    %v107 = vunpack.c.l.b16 %v59
    %v108 = vunpack.c.l.b16 %v60
    %v109 = vunpack.c.l.b16 %v61
    %v110 = vunpack.c.l.b16 %v62
    %v111 = vunpack.c.l.b16 %v63
    %v112 = vunpack.c.l.b16 %v64
    %v113 = vunpack.c.l.b16 %v65
    %v114 = vunpack.c.l.b16 %v66
    %v115 = vunpack.c.l.b16 %v67
    %v116 = vunpack.c.l.b16 %v68
    %v117 = vunpack.c.l.b16 %v69
    %v118 = vpack.c.b16 %v103, %v102
    %v119 = vpack.c.b16 %v105, %v104
    %v120 = vpack.c.b16 %v107, %v106
    %v121 = vpack.c.b16 %v109, %v108
    %v122 = vpack.c.b16 %v111, %v110
    %v123 = vpack.c.b16 %v113, %v112
    %v124 = vpack.c.b16 %v115, %v114
    %v125 = vpack.c.b16 %v117, %v116
    %v150 = vunpack.c.l.b16 %v70
    %v151 = vunpack.c.l.b16 %v71
    %v152 = vunpack.c.l.b16 %v72
    %v153 = vunpack.c.l.b16 %v73
    %v154 = vunpack.c.l.b16 %v74
    %v155 = vunpack.c.l.b16 %v75
    %v156 = vunpack.c.l.b16 %v76
    %v157 = vunpack.c.l.b16 %v77
    %v158 = vunpack.c.l.b16 %v78
    %v159 = vunpack.c.l.b16 %v79
    %v160 = vunpack.c.l.b16 %v80
    %v161 = vunpack.c.l.b16 %v81
    %v162 = vunpack.c.l.b16 %v82
    %v163 = vunpack.c.l.b16 %v83
    %v164 = vunpack.c.l.b16 %v84
    %v165 = vunpack.c.l.b16 %v85
    %v166 = vpack.c.b16 %v151, %v150
    %v167 = vpack.c.b16 %v153, %v152
    %v168 = vpack.c.b16 %v155, %v154
    %v169 = vpack.c.b16 %v157, %v156
    %v170 = vpack.c.b16 %v159, %v158
    %v171 = vpack.c.b16 %v161, %v160
    %v172 = vpack.c.b16 %v163, %v162
    %v173 = vpack.c.b16 %v165, %v164
    %182 = vmatprep.subr.bf16.mxu0 0
    %183 = vmatpush1.bf16.msra.mxu0 %v173
    %184 = vmatprep.subr.bf16.mxu0 0
    %185 = vmatpush1.bf16.msra.mxu0 %v172
    %186 = vmatprep.subr.bf16.mxu0 0
    %187 = vmatpush1.bf16.msra.mxu0 %v171
    %188 = vmatprep.subr.bf16.mxu0 0
    %189 = vmatpush1.bf16.msra.mxu0 %v170
    %190 = vmatprep.subr.bf16.mxu0 0
    %191 = vmatpush1.bf16.msra.mxu0 %v169
    %192 = vmatprep.subr.bf16.mxu0 0
    %193 = vmatpush1.bf16.msra.mxu0 %v168
    %194 = vmatprep.subr.bf16.mxu0 0
    %195 = vmatpush1.bf16.msra.mxu0 %v167
    %196 = vmatprep.subr.bf16.mxu0 0
    %197 = vmatpush1.bf16.msra.mxu0 %v166
    %198 = vmatprep.subr.bf16.mxu0 0
    %199 = vmatpush2.bf16.msra.mxu0 0
    %200 = vmatprep.subr.bf16.mxu0 0
    %201 = vmatpush2.bf16.msra.mxu0 0
    %202 = vmatprep.subr.bf16.mxu0 0
    %203 = vmatpush2.bf16.msra.mxu0 0
    %204 = vmatprep.subr.bf16.mxu0 0
    %205 = vmatpush2.bf16.msra.mxu0 0
    %206 = vmatprep.subr.bf16.mxu0 0
    %207 = vmatpush2.bf16.msra.mxu0 0
    %208 = vmatprep.subr.bf16.mxu0 0
    %209 = vmatpush2.bf16.msra.mxu0 0
    %210 = vmatprep.subr.bf16.mxu0 0
    %211 = vmatpush2.bf16.msra.mxu0 0
    %212 = vmatprep.subr.bf16.mxu0 0
    %213 = vmatpush2.bf16.msra.mxu0 0
    %214 = vmatprep.mubr.bf16.mxu0 0
    %215 = vmatmul.mubr.bf16.gmra.mxu0 %v118
    %v216 = vpop.f32.mrf.mxu0
    %v217 = vadd.f32 0.0, %v216
    %v218 = vpop.f32.mrf.mxu0
    %v219 = vpop.f32.mrf.mxu0
    %v220 = vadd.f32 0.0, %v219
    %v221 = vpop.f32.mrf.mxu0
    %222 = vmatprep.mubr.bf16.mxu0 0
    %223 = vmatmul.mubr.bf16.gmra.mxu0 %v119
    %v224 = vpop.f32.mrf.mxu0
    %v225 = vadd.f32 0.0, %v224
    %v226 = vpop.f32.mrf.mxu0
    %v227 = vpop.f32.mrf.mxu0
    %v228 = vadd.f32 0.0, %v227
    %v229 = vpop.f32.mrf.mxu0
    %230 = vmatprep.mubr.bf16.mxu0 0
    %231 = vmatmul.mubr.bf16.gmra.mxu0 %v120
    %v232 = vpop.f32.mrf.mxu0
    %v233 = vadd.f32 0.0, %v232
    %v234 = vpop.f32.mrf.mxu0
    %v235 = vpop.f32.mrf.mxu0
    %v236 = vadd.f32 0.0, %v235
    %v237 = vpop.f32.mrf.mxu0
    %238 = vmatprep.mubr.bf16.mxu0 0
    %239 = vmatmul.mubr.bf16.gmra.mxu0 %v121
    %v240 = vpop.f32.mrf.mxu0
    %v241 = vadd.f32 0.0, %v240
    %v242 = vpop.f32.mrf.mxu0
    %v243 = vpop.f32.mrf.mxu0
    %v244 = vadd.f32 0.0, %v243
    %v245 = vpop.f32.mrf.mxu0
    %246 = vmatprep.mubr.bf16.mxu0 0
    %247 = vmatmul.mubr.bf16.gmra.mxu0 %v122
    %v248 = vpop.f32.mrf.mxu0
    %v249 = vadd.f32 0.0, %v248
    %v250 = vpop.f32.mrf.mxu0
    %v251 = vpop.f32.mrf.mxu0
    %v252 = vadd.f32 0.0, %v251
    %v253 = vpop.f32.mrf.mxu0
    %254 = vmatprep.mubr.bf16.mxu0 0
    %255 = vmatmul.mubr.bf16.gmra.mxu0 %v123
    %v256 = vpop.f32.mrf.mxu0
    %v257 = vadd.f32 0.0, %v256
    %v258 = vpop.f32.mrf.mxu0
    %v259 = vpop.f32.mrf.mxu0
    %v260 = vadd.f32 0.0, %v259
    %v261 = vpop.f32.mrf.mxu0
    %262 = vmatprep.mubr.bf16.mxu0 0
    %263 = vmatmul.mubr.bf16.gmra.mxu0 %v124
    %v264 = vpop.f32.mrf.mxu0
    %v265 = vadd.f32 0.0, %v264
    %v266 = vpop.f32.mrf.mxu0
    %v267 = vpop.f32.mrf.mxu0
    %v268 = vadd.f32 0.0, %v267
    %v269 = vpop.f32.mrf.mxu0
    %270 = vmatprep.mubr.bf16.mxu0 0
    %271 = vmatmul.mubr.bf16.gmra.mxu0 %v125
    %v272 = vpop.f32.mrf.mxu0
    %v273 = vadd.f32 0.0, %v272
    %v274 = vpop.f32.mrf.mxu0
    %v275 = vpop.f32.mrf.mxu0
    %v276 = vadd.f32 0.0, %v275
    %v277 = vpop.f32.mrf.mxu0
    %278 = vdwg.mxu0
    %s279 = sld [smem:[#allocation2]]
    %v280 = vstv %s279
    %v281 = vmul.f32 %v217, %v280
    %v282 = vmul.f32 %v220, %v280
    %v283 = vmul.f32 %v225, %v280
    %v284 = vmul.f32 %v228, %v280
    %v285 = vmul.f32 %v233, %v280
    %v286 = vmul.f32 %v236, %v280
    %v287 = vmul.f32 %v241, %v280
    %v288 = vmul.f32 %v244, %v280
    %v289 = vmul.f32 %v249, %v280
    %v290 = vmul.f32 %v252, %v280
    %v291 = vmul.f32 %v257, %v280
    %v292 = vmul.f32 %v260, %v280
    %v293 = vmul.f32 %v265, %v280
    %v294 = vmul.f32 %v268, %v280
    %v295 = vmul.f32 %v273, %v280
    %v296 = vmul.f32 %v276, %v280
    %s297 = sld [smem:[#allocation3]]
    %v298 = vstv %s297
    %v299 = vadd.f32 %v281, %v298
    %v300 = vadd.f32 %v282, %v298
    %v301 = vadd.f32 %v283, %v298
    %v302 = vadd.f32 %v284, %v298
    %v303 = vadd.f32 %v285, %v298
    %v304 = vadd.f32 %v286, %v298
    %v305 = vadd.f32 %v287, %v298
    %v306 = vadd.f32 %v288, %v298
    %v307 = vadd.f32 %v289, %v298
    %v308 = vadd.f32 %v290, %v298
    %v309 = vadd.f32 %v291, %v298
    %v310 = vadd.f32 %v292, %v298
    %v311 = vadd.f32 %v293, %v298
    %v312 = vadd.f32 %v294, %v298
    %v313 = vadd.f32 %v295, %v298
    %v314 = vadd.f32 %v296, %v298
    %v315 = vsub.f32 0.0, %v299
    %v316 = vsub.f32 0.0, %v300
    %v317 = vsub.f32 0.0, %v301
    %v318 = vsub.f32 0.0, %v302
    %v319 = vsub.f32 0.0, %v303
    %v320 = vsub.f32 0.0, %v304
    %v321 = vsub.f32 0.0, %v305
    %v322 = vsub.f32 0.0, %v306
    %v323 = vsub.f32 0.0, %v307
    %v324 = vsub.f32 0.0, %v308
    %v325 = vsub.f32 0.0, %v309
    %v326 = vsub.f32 0.0, %v310
    %v327 = vsub.f32 0.0, %v311
    %v328 = vsub.f32 0.0, %v312
    %v329 = vsub.f32 0.0, %v313
    %v330 = vsub.f32 0.0, %v314
    %v331 = vmin.f32 %v315, 0.0
    %v332 = vmin.f32 %v316, 0.0
    %v333 = vmin.f32 %v317, 0.0
    %v334 = vmin.f32 %v318, 0.0
    %v335 = vmin.f32 %v319, 0.0
    %v336 = vmin.f32 %v320, 0.0
    %v337 = vmin.f32 %v321, 0.0
    %v338 = vmin.f32 %v322, 0.0
    %v339 = vmin.f32 %v323, 0.0
    %v340 = vmin.f32 %v324, 0.0
    %v341 = vmin.f32 %v325, 0.0
    %v342 = vmin.f32 %v326, 0.0
    %v343 = vmin.f32 %v327, 0.0
    %v344 = vmin.f32 %v328, 0.0
    %v345 = vmin.f32 %v329, 0.0
    %v346 = vmin.f32 %v330, 0.0
    %v347 = vand.u32 2147483647, %v299
    %v348 = vand.u32 2147483647, %v300
    %v349 = vand.u32 2147483647, %v301
    %v350 = vand.u32 2147483647, %v302
    %v351 = vand.u32 2147483647, %v303
    %v352 = vand.u32 2147483647, %v304
    %v353 = vand.u32 2147483647, %v305
    %v354 = vand.u32 2147483647, %v306
    %v355 = vand.u32 2147483647, %v307
    %v356 = vand.u32 2147483647, %v308
    %v357 = vand.u32 2147483647, %v309
    %v358 = vand.u32 2147483647, %v310
    %v359 = vand.u32 2147483647, %v311
    %v360 = vand.u32 2147483647, %v312
    %v361 = vand.u32 2147483647, %v313
    %v362 = vand.u32 2147483647, %v314
    %v363 = vsub.f32 0.0, %v347
    %v364 = vsub.f32 0.0, %v348
    %v365 = vsub.f32 0.0, %v349
    %v366 = vsub.f32 0.0, %v350
    %v367 = vsub.f32 0.0, %v351
    %v368 = vsub.f32 0.0, %v352
    %v369 = vsub.f32 0.0, %v353
    %v370 = vsub.f32 0.0, %v354
    %v371 = vsub.f32 0.0, %v355
    %v372 = vsub.f32 0.0, %v356
    %v373 = vsub.f32 0.0, %v357
    %v374 = vsub.f32 0.0, %v358
    %v375 = vsub.f32 0.0, %v359
    %v376 = vsub.f32 0.0, %v360
    %v377 = vsub.f32 0.0, %v361
    %v378 = vsub.f32 0.0, %v362
    %v379 = vmul.f32 %v363, 1.442695
    %v380 = vpow.pop %v379
    %v381 = vmul.f32 %v364, 1.442695
    %v382 = vpow.pop %v381
    %v383 = vmul.f32 %v365, 1.442695
    %v384 = vpow.pop %v383
    %v385 = vmul.f32 %v366, 1.442695
    %v386 = vpow.pop %v385
    %v387 = vmul.f32 %v367, 1.442695
    %v388 = vpow.pop %v387
    %v389 = vmul.f32 %v368, 1.442695
    %v390 = vpow.pop %v389
    %v391 = vmul.f32 %v369, 1.442695
    %v392 = vpow.pop %v391
    %v393 = vmul.f32 %v370, 1.442695
    %v394 = vpow.pop %v393
    %v395 = vmul.f32 %v371, 1.442695
    %v396 = vpow.pop %v395
    %v397 = vmul.f32 %v372, 1.442695
    %v398 = vpow.pop %v397
    %v399 = vmul.f32 %v373, 1.442695
    %v400 = vpow.pop %v399
    %v401 = vmul.f32 %v374, 1.442695
    %v402 = vpow.pop %v401
    %v403 = vmul.f32 %v375, 1.442695
    %v404 = vpow.pop %v403
    %v405 = vmul.f32 %v376, 1.442695
    %v406 = vpow.pop %v405
    %v407 = vmul.f32 %v377, 1.442695
    %v408 = vpow.pop %v407
    %v409 = vmul.f32 %v378, 1.442695
    %v410 = vpow.pop %v409
    %v411 = vadd.f32 %v380, 1.0
    %v412 = vlog2.pop %v411
    %v413 = vmul.f32 %v412, 0.6931472
    %v414 = vmul.f32 -0.5, %v380
    %v415 = vadd.f32 %v414, 1.0
    %v416 = vmul.f32 %v415, %v380
    %v417 = vand.u32 2147483647, %v380
    %vm418 = vcmp.lt.f32.partialorder %v417, 0.0004427343
    %v419 = vsel %vm418, %v416, %v413
    %v420 = vadd.f32 %v382, 1.0
    %v421 = vlog2.pop %v420
    %v422 = vmul.f32 %v421, 0.6931472
    %v423 = vmul.f32 -0.5, %v382
    %v424 = vadd.f32 %v423, 1.0
    %v425 = vmul.f32 %v424, %v382
    %v426 = vand.u32 2147483647, %v382
    %vm427 = vcmp.lt.f32.partialorder %v426, 0.0004427343
    %v428 = vsel %vm427, %v425, %v422
    %v429 = vadd.f32 %v384, 1.0
    %v430 = vlog2.pop %v429
    %v431 = vmul.f32 %v430, 0.6931472
    %v432 = vmul.f32 -0.5, %v384
    %v433 = vadd.f32 %v432, 1.0
    %v434 = vmul.f32 %v433, %v384
    %v435 = vand.u32 2147483647, %v384
    %vm436 = vcmp.lt.f32.partialorder %v435, 0.0004427343
    %v437 = vsel %vm436, %v434, %v431
    %v438 = vadd.f32 %v386, 1.0
    %v439 = vlog2.pop %v438
    %v440 = vmul.f32 %v439, 0.6931472
    %v441 = vmul.f32 -0.5, %v386
    %v442 = vadd.f32 %v441, 1.0
    %v443 = vmul.f32 %v442, %v386
    %v444 = vand.u32 2147483647, %v386
    %vm445 = vcmp.lt.f32.partialorder %v444, 0.0004427343
    %v446 = vsel %vm445, %v443, %v440
    %v447 = vadd.f32 %v388, 1.0
    %v448 = vlog2.pop %v447
    %v449 = vmul.f32 %v448, 0.6931472
    %v450 = vmul.f32 -0.5, %v388
    %v451 = vadd.f32 %v450, 1.0
    %v452 = vmul.f32 %v451, %v388
    %v453 = vand.u32 2147483647, %v388
    %vm454 = vcmp.lt.f32.partialorder %v453, 0.0004427343
    %v455 = vsel %vm454, %v452, %v449
    %v456 = vadd.f32 %v390, 1.0
    %v457 = vlog2.pop %v456
    %v458 = vmul.f32 %v457, 0.6931472
    %v459 = vmul.f32 -0.5, %v390
    %v460 = vadd.f32 %v459, 1.0
    %v461 = vmul.f32 %v460, %v390
    %v462 = vand.u32 2147483647, %v390
    %vm463 = vcmp.lt.f32.partialorder %v462, 0.0004427343
    %v464 = vsel %vm463, %v461, %v458
    %v465 = vadd.f32 %v392, 1.0
    %v466 = vlog2.pop %v465
    %v467 = vmul.f32 %v466, 0.6931472
    %v468 = vmul.f32 -0.5, %v392
    %v469 = vadd.f32 %v468, 1.0
    %v470 = vmul.f32 %v469, %v392
    %v471 = vand.u32 2147483647, %v392
    %vm472 = vcmp.lt.f32.partialorder %v471, 0.0004427343
    %v473 = vsel %vm472, %v470, %v467
    %v474 = vadd.f32 %v394, 1.0
    %v475 = vlog2.pop %v474
    %v476 = vmul.f32 %v475, 0.6931472
    %v477 = vmul.f32 -0.5, %v394
    %v478 = vadd.f32 %v477, 1.0
    %v479 = vmul.f32 %v478, %v394
    %v480 = vand.u32 2147483647, %v394
    %vm481 = vcmp.lt.f32.partialorder %v480, 0.0004427343
    %v482 = vsel %vm481, %v479, %v476
    %v483 = vadd.f32 %v396, 1.0
    %v484 = vlog2.pop %v483
    %v485 = vmul.f32 %v484, 0.6931472
    %v486 = vmul.f32 -0.5, %v396
    %v487 = vadd.f32 %v486, 1.0
    %v488 = vmul.f32 %v487, %v396
    %v489 = vand.u32 2147483647, %v396
    %vm490 = vcmp.lt.f32.partialorder %v489, 0.0004427343
    %v491 = vsel %vm490, %v488, %v485
    %v492 = vadd.f32 %v398, 1.0
    %v493 = vlog2.pop %v492
    %v494 = vmul.f32 %v493, 0.6931472
    %v495 = vmul.f32 -0.5, %v398
    %v496 = vadd.f32 %v495, 1.0
    %v497 = vmul.f32 %v496, %v398
    %v498 = vand.u32 2147483647, %v398
    %vm499 = vcmp.lt.f32.partialorder %v498, 0.0004427343
    %v500 = vsel %vm499, %v497, %v494
    %v501 = vadd.f32 %v400, 1.0
    %v502 = vlog2.pop %v501
    %v503 = vmul.f32 %v502, 0.6931472
    %v504 = vmul.f32 -0.5, %v400
    %v505 = vadd.f32 %v504, 1.0
    %v506 = vmul.f32 %v505, %v400
    %v507 = vand.u32 2147483647, %v400
    %vm508 = vcmp.lt.f32.partialorder %v507, 0.0004427343
    %v509 = vsel %vm508, %v506, %v503
    %v510 = vadd.f32 %v402, 1.0
    %v511 = vlog2.pop %v510
    %v512 = vmul.f32 %v511, 0.6931472
    %v513 = vmul.f32 -0.5, %v402
    %v514 = vadd.f32 %v513, 1.0
    %v515 = vmul.f32 %v514, %v402
    %v516 = vand.u32 2147483647, %v402
    %vm517 = vcmp.lt.f32.partialorder %v516, 0.0004427343
    %v518 = vsel %vm517, %v515, %v512
    %v519 = vadd.f32 %v404, 1.0
    %v520 = vlog2.pop %v519
    %v521 = vmul.f32 %v520, 0.6931472
    %v522 = vmul.f32 -0.5, %v404
    %v523 = vadd.f32 %v522, 1.0
    %v524 = vmul.f32 %v523, %v404
    %v525 = vand.u32 2147483647, %v404
    %vm526 = vcmp.lt.f32.partialorder %v525, 0.0004427343
    %v527 = vsel %vm526, %v524, %v521
    %v528 = vadd.f32 %v406, 1.0
    %v529 = vlog2.pop %v528
    %v530 = vmul.f32 %v529, 0.6931472
    %v531 = vmul.f32 -0.5, %v406
    %v532 = vadd.f32 %v531, 1.0
    %v533 = vmul.f32 %v532, %v406
    %v534 = vand.u32 2147483647, %v406
    %vm535 = vcmp.lt.f32.partialorder %v534, 0.0004427343
    %v536 = vsel %vm535, %v533, %v530
    %v537 = vadd.f32 %v408, 1.0
    %v538 = vlog2.pop %v537
    %v539 = vmul.f32 %v538, 0.6931472
    %v540 = vmul.f32 -0.5, %v408
    %v541 = vadd.f32 %v540, 1.0
    %v542 = vmul.f32 %v541, %v408
    %v543 = vand.u32 2147483647, %v408
    %vm544 = vcmp.lt.f32.partialorder %v543, 0.0004427343
    %v545 = vsel %vm544, %v542, %v539
    %v546 = vadd.f32 %v410, 1.0
    %v547 = vlog2.pop %v546
    %v548 = vmul.f32 %v547, 0.6931472
    %v549 = vmul.f32 -0.5, %v410
    %v550 = vadd.f32 %v549, 1.0
    %v551 = vmul.f32 %v550, %v410
    %v552 = vand.u32 2147483647, %v410
    %vm553 = vcmp.lt.f32.partialorder %v552, 0.0004427343
    %v554 = vsel %vm553, %v551, %v548
    %v555 = vsub.f32 %v331, %v419
    %v556 = vsub.f32 %v332, %v428
    %v557 = vsub.f32 %v333, %v437
    %v558 = vsub.f32 %v334, %v446
    %v559 = vsub.f32 %v335, %v455
    %v560 = vsub.f32 %v336, %v464
    %v561 = vsub.f32 %v337, %v473
    %v562 = vsub.f32 %v338, %v482
    %v563 = vsub.f32 %v339, %v491
    %v564 = vsub.f32 %v340, %v500
    %v565 = vsub.f32 %v341, %v509
    %v566 = vsub.f32 %v342, %v518
    %v567 = vsub.f32 %v343, %v527
    %v568 = vsub.f32 %v344, %v536
    %v569 = vsub.f32 %v345, %v545
    %v570 = vsub.f32 %v346, %v554
    %v571 = vld [vmem:[#allocation9] sm:$0xff]
    %v572 = vadd.f32 %v555, %v556
    %v573 = vadd.f32 %v572, %v557
    %v574 = vadd.f32 %v573, %v558
    %v575 = vadd.f32 %v574, %v559
    %v576 = vadd.f32 %v575, %v560
    %v577 = vadd.f32 %v576, %v561
    %v578 = vadd.f32 %v577, %v562
    %v579 = vadd.f32 %v578, %v563
    %v580 = vadd.f32 %v579, %v564
    %v581 = vadd.f32 %v580, %v565
    %v582 = vadd.f32 %v581, %v566
    %v583 = vadd.f32 %v582, %v567
    %v584 = vadd.f32 %v583, %v568
    %v585 = vadd.f32 %v584, %v569
    %v586 = vadd.f32 %v585, %v570
    %v587 = vadd.f32 %v571, %v586
    %588 = vst [vmem:[#allocation9] sm:$0xff] %v587
    %p589 = scmp.eq.s32.totalorder 0, 0
    // Predicated region
    $region30: #{tpu_custom_call.1} parent=1 // pred_check
      %p590 = pneg %p589
    $region31: #{tpu_custom_call.1} parent=1 // pred_check_branch
      %592 = sbr.rel (%p590) target = $region33
    $region32: #{tpu_custom_call.1} parent=1 // pred_region
      %v593 = vlaneseq
      %v594 = vshrl.u32 %v593, 7
      %v595 = vadd.s32 %v594, 8
      %v596 = vadd.s32 %v594, 16
      %v597 = vadd.s32 %v594, 24
      %v598 = vadd.s32 %v594, 32
      %v599 = vadd.s32 %v594, 40
      %v600 = vadd.s32 %v594, 48
      %v601 = vadd.s32 %v594, 56
      %v602 = vadd.s32 %v594, 64
      %v603 = vadd.s32 %v594, 72
      %v604 = vadd.s32 %v594, 80
      %v605 = vadd.s32 %v594, 88
      %v606 = vadd.s32 %v594, 96
      %v607 = vadd.s32 %v594, 104
      %v608 = vadd.s32 %v594, 112
      %v609 = vadd.s32 %v594, 120
      %v610 = vlaneseq
      %v611 = vand.u32 %v610, 127
      %vm612 = vcmp.eq.s32.totalorder %v594, %v611
      %vm613 = vcmp.eq.s32.totalorder %v595, %v611
      %vm614 = vcmp.eq.s32.totalorder %v596, %v611
      %vm615 = vcmp.eq.s32.totalorder %v597, %v611
      %vm616 = vcmp.eq.s32.totalorder %v598, %v611
      %vm617 = vcmp.eq.s32.totalorder %v599, %v611
      %vm618 = vcmp.eq.s32.totalorder %v600, %v611
      %vm619 = vcmp.eq.s32.totalorder %v601, %v611
      %vm620 = vcmp.eq.s32.totalorder %v602, %v611
      %vm621 = vcmp.eq.s32.totalorder %v603, %v611
      %vm622 = vcmp.eq.s32.totalorder %v604, %v611
      %vm623 = vcmp.eq.s32.totalorder %v605, %v611
      %vm624 = vcmp.eq.s32.totalorder %v606, %v611
      %vm625 = vcmp.eq.s32.totalorder %v607, %v611
      %vm626 = vcmp.eq.s32.totalorder %v608, %v611
      %vm627 = vcmp.eq.s32.totalorder %v609, %v611
      %s628 = smul.u32 0, 128
      %v629 = vstv %s628
      %v630 = vadd.s32 %v629, %v594
      %v631 = vadd.s32 %v629, %v595
      %v632 = vadd.s32 %v629, %v596
      %v633 = vadd.s32 %v629, %v597
      %v634 = vadd.s32 %v629, %v598
      %v635 = vadd.s32 %v629, %v599
      %v636 = vadd.s32 %v629, %v600
      %v637 = vadd.s32 %v629, %v601
      %v638 = vadd.s32 %v629, %v602
      %v639 = vadd.s32 %v629, %v603
      %v640 = vadd.s32 %v629, %v604
      %v641 = vadd.s32 %v629, %v605
      %v642 = vadd.s32 %v629, %v606
      %v643 = vadd.s32 %v629, %v607
      %v644 = vadd.s32 %v629, %v608
      %v645 = vadd.s32 %v629, %v609
      %vm646 = vcmp.lt.s32.totalorder %v630, 8
      %vm647 = vcmp.lt.s32.totalorder %v631, 8
      %vm648 = vcmp.lt.s32.totalorder %v632, 8
      %vm649 = vcmp.lt.s32.totalorder %v633, 8
      %vm650 = vcmp.lt.s32.totalorder %v634, 8
      %vm651 = vcmp.lt.s32.totalorder %v635, 8
      %vm652 = vcmp.lt.s32.totalorder %v636, 8
      %vm653 = vcmp.lt.s32.totalorder %v637, 8
      %vm654 = vcmp.lt.s32.totalorder %v638, 8
      %vm655 = vcmp.lt.s32.totalorder %v639, 8
      %vm656 = vcmp.lt.s32.totalorder %v640, 8
      %vm657 = vcmp.lt.s32.totalorder %v641, 8
      %vm658 = vcmp.lt.s32.totalorder %v642, 8
      %vm659 = vcmp.lt.s32.totalorder %v643, 8
      %vm660 = vcmp.lt.s32.totalorder %v644, 8
      %vm661 = vcmp.lt.s32.totalorder %v645, 8
      %vm662 = vmand %vm612, %vm646
      %vm663 = vmand %vm613, %vm647
      %vm664 = vmand %vm614, %vm648
      %vm665 = vmand %vm615, %vm649
      %vm666 = vmand %vm616, %vm650
      %vm667 = vmand %vm617, %vm651
      %vm668 = vmand %vm618, %vm652
      %vm669 = vmand %vm619, %vm653
      %vm670 = vmand %vm620, %vm654
      %vm671 = vmand %vm621, %vm655
      %vm672 = vmand %vm622, %vm656
      %vm673 = vmand %vm623, %vm657
      %vm674 = vmand %vm624, %vm658
      %vm675 = vmand %vm625, %vm659
      %vm676 = vmand %vm626, %vm660
      %vm677 = vmand %vm627, %vm661
      %v678 = vsel %vm662, %v299, 0.0
      %v679 = vsel %vm663, %v300, 0.0
      %v680 = vsel %vm664, %v301, 0.0
      %v681 = vsel %vm665, %v302, 0.0
      %v682 = vsel %vm666, %v303, 0.0
      %v683 = vsel %vm667, %v304, 0.0
      %v684 = vsel %vm668, %v305, 0.0
      %v685 = vsel %vm669, %v306, 0.0
      %v686 = vsel %vm670, %v307, 0.0
      %v687 = vsel %vm671, %v308, 0.0
      %v688 = vsel %vm672, %v309, 0.0
      %v689 = vsel %vm673, %v310, 0.0
      %v690 = vsel %vm674, %v311, 0.0
      %v691 = vsel %vm675, %v312, 0.0
      %v692 = vsel %vm676, %v313, 0.0
      %v693 = vsel %vm677, %v314, 0.0
      %v694 = vadd.f32 %v678, %v679
      %v695 = vadd.f32 %v694, %v680
      %v696 = vadd.f32 %v695, %v681
      %v697 = vadd.f32 %v696, %v682
      %v698 = vadd.f32 %v697, %v683
      %v699 = vadd.f32 %v698, %v684
      %v700 = vadd.f32 %v699, %v685
      %v701 = vadd.f32 %v700, %v686
      %v702 = vadd.f32 %v701, %v687
      %v703 = vadd.f32 %v702, %v688
      %v704 = vadd.f32 %v703, %v689
      %v705 = vadd.f32 %v704, %v690
      %v706 = vadd.f32 %v705, %v691
      %v707 = vadd.f32 %v706, %v692
      %v708 = vadd.f32 %v707, %v693
      %v709 = vld [vmem:[#allocation9] sm:$0xff]
      %v710 = vadd.f32 %v709, %v708
      %711 = vst [vmem:[#allocation9] sm:$0xff] %v710
    $region33: #{tpu_custom_call.1} parent=1 // pred_fallthru
      _
    // Predicated region
    $region34: #{tpu_custom_call.1} parent=1 // pred_check
      _
    $region35: #{tpu_custom_call.1} parent=1 // pred_check_branch
      %713 = sbr.rel (0) target = $region37
    $region36: #{tpu_custom_call.1} parent=1 // pred_region
      %s715 = ssub.s32 128, 128
      %716 = vsyncadd [#allocation6], %s715
      %s718 = sshll.u32 [#allocation9], 4
      %s719 = int_to_ptr.vmem [resolvable:$true] %s718
      %721 = dma.vmem_to_hbm [thread:$0]  %s719, 128, %s4, [#allocation6]
    $region37: #{tpu_custom_call.1} parent=1 // pred_fallthru
      _
    // Predicated region
    $region38: #{tpu_custom_call.1} parent=1 // pred_check
      _
    $region39: #{tpu_custom_call.1} parent=1 // pred_check_branch
      %723 = sbr.rel (0) target = $region41
    $region40: #{tpu_custom_call.1} parent=1 // pred_region
      %724 = dma.done [#allocation6], 128
    $region41: #{tpu_custom_call.1} parent=1 // pred_fallthru
      _
    %725 = vsyncpa [#allocation5], 1
    %726 = vsyncpa [#allocation8], 1
    %727 = vsyncpa [#allocation6], 1

</llo_original>
